<compile_context>
chip_gen: v5e
topology: v5e:2x2
jax: 0.10.0
libtpu: 0.0.40
codegen_flags: <defaults>
</compile_context>

<pallas_src>
import functools

import jax
import jax.numpy as jnp
from jax.experimental import pallas as pl
from jax.experimental.pallas import tpu as pltpu

_EPS = 1e-5


def _round_up(x, m):
    return (x + m - 1) // m * m


def _phase1_kernel(x_ref, w_ref, o_ref, stats_ref):
    """Per (half, M-tile): o = x @ w; accumulate per-channel sum / sum-of-squares.

    x_ref:     (tm, C_in)        activation tile (model dtype)
    w_ref:     (C_in, C_half)    this half's 1x1-conv weight (compute dtype)
    o_ref:     (tm, C_half) f32  un-normalized conv output tile
    stats_ref: (2, C_half) f32   rows = [sum, sum_sq]; resident across the M axis
    """
    k = pl.program_id(1)

    @pl.when(k == 0)
    def _():
        stats_ref[...] = jnp.zeros_like(stats_ref)

    x = x_ref[...].astype(w_ref.dtype)          # bf16 operands when model is bf16
    o = jnp.dot(x, w_ref[...], preferred_element_type=jnp.float32)
    o_ref[...] = o

    stats_ref[0:1, :] = stats_ref[0:1, :] + jnp.sum(o, axis=0, keepdims=True)
    stats_ref[1:2, :] = stats_ref[1:2, :] + jnp.sum(o * o, axis=0, keepdims=True)


def _phase2_kernel(o_ref, stats_ref, y_ref, *, inv_m):
    """Normalize each tile with the global (per-half) channel statistics."""
    stats = stats_ref[...]                       # (2, C_half) f32
    mean = stats[0:1, :] * inv_m                 # (1, C_half)
    var = stats[1:2, :] * inv_m - mean * mean    # biased variance
    inv_std = jax.lax.rsqrt(var + _EPS)          # EUP slot
    y_ref[...] = ((o_ref[...] - mean) * inv_std).astype(y_ref.dtype)


@functools.partial(jax.jit, static_argnames=("tm",))
def factorized_reduce(x, w1, w2, *, tm=1024):
    """x: (N, C_in, H, W) NCHW; w1, w2: (C_out//2, C_in, 1, 1).  Returns NCHW."""
    n, c_in, h, w = x.shape
    c_half = w1.shape[0]
    c_out = 2 * c_half
    assert h % 2 == 0 and w % 2 == 0, "even H/W required for the channel concat"
    ho, wo = h // 2, w // 2
    m = n * ho * wo

    compute_dtype = jnp.bfloat16 if x.dtype == jnp.bfloat16 else jnp.float32

    # ---- glue: strided subsample + channels-last flatten (stays in model dtype) ----
    x_nhwc = jnp.transpose(x, (0, 2, 3, 1))                     # (N, H, W, C_in)
    xe = x_nhwc[:, 0::2, 0::2, :].reshape(m, c_in)              # conv1 (stride 2) samples
    xo = x_nhwc[:, 1::2, 1::2, :].reshape(m, c_in)              # conv2 on x[:, :, 1:, 1:]
    x_pair = jnp.stack([xe, xo], axis=0)                        # (2, M, C_in)

    # 1x1 conv weights -> (C_in, C_half) matmul operands, stacked per half (tiny)
    w_pair = jnp.stack(
        [jnp.transpose(w1.reshape(c_half, c_in)),
         jnp.transpose(w2.reshape(c_half, c_in))], axis=0).astype(compute_dtype)

    # ---- M tiling.  Zero-padded rows are exact zeros after the matmul, so they
    #      contribute nothing to sum / sum_sq and BN stats stay exact. ----
    tm = min(tm, _round_up(m, 8))
    m_pad = _round_up(m, tm)
    if m_pad != m:
        x_pair = jnp.pad(x_pair, ((0, 0), (0, m_pad - m), (0, 0)))
    n_tiles = m_pad // tm
    grid = (2, n_tiles)

    x_spec = pl.BlockSpec((None, tm, c_in), lambda hh, k: (hh, k, 0))
    w_spec = pl.BlockSpec((None, c_in, c_half), lambda hh, k: (hh, 0, 0))
    o_spec = pl.BlockSpec((None, tm, c_half), lambda hh, k: (hh, k, 0))
    stats_spec = pl.BlockSpec((None, 2, c_half), lambda hh, k: (hh, 0, 0))

    x_bytes = x_pair.dtype.itemsize
    out_dtype = x.dtype
    out_bytes = jnp.dtype(out_dtype).itemsize

    # VMEM budget sized to the chosen tiles (double-buffered in/out + headroom),
    # kept well under v7x's 64 MiB physical VMEM.
    vmem_need = (2 * tm * c_in * x_bytes + 2 * tm * c_half * 4
                 + 2 * c_in * c_half * w_pair.dtype.itemsize
                 + 4 * tm * c_half * 4)
    vmem_limit = int(min(max(vmem_need + (4 << 20), 16 << 20), 48 << 20))

    # ---- phase 1: matmuls + global per-channel sum / sum_sq accumulation ----
    o_unnorm, stats = pl.pallas_call(
        _phase1_kernel,
        grid=grid,
        in_specs=[x_spec, w_spec],
        out_specs=(o_spec, stats_spec),
        out_shape=(jax.ShapeDtypeStruct((2, m_pad, c_half), jnp.float32),
                   jax.ShapeDtypeStruct((2, 2, c_half), jnp.float32)),
        compiler_params=pltpu.CompilerParams(
            dimension_semantics=("parallel", "arbitrary"),
            vmem_limit_bytes=vmem_limit),
        cost_estimate=pl.CostEstimate(
            flops=2 * 2 * m_pad * c_in * c_half,
            transcendentals=0,
            bytes_accessed=(2 * m_pad * c_in * x_bytes
                            + 2 * c_in * c_half * w_pair.dtype.itemsize
                            + 2 * m_pad * c_half * 4 + 2 * 2 * c_half * 4)),
    )(x_pair, w_pair)

    # ---- phase 2: normalize with the global statistics ----
    y = pl.pallas_call(
        functools.partial(_phase2_kernel, inv_m=1.0 / m),
        grid=grid,
        in_specs=[o_spec, stats_spec],
        out_specs=pl.BlockSpec((None, tm, c_half), lambda hh, k: (hh, k, 0)),
        out_shape=jax.ShapeDtypeStruct((2, m_pad, c_half), out_dtype),
        compiler_params=pltpu.CompilerParams(
            dimension_semantics=("parallel", "parallel"),
            vmem_limit_bytes=vmem_limit),
        cost_estimate=pl.CostEstimate(
            flops=4 * m_pad * c_half,
            transcendentals=2 * c_half,
            bytes_accessed=2 * m_pad * c_half * (4 + out_bytes) + 2 * 2 * c_half * 4),
    )(o_unnorm, stats)

    # ---- glue: (2, M, C_half) -> NCHW with the two halves concatenated on channels ----
    y = y[:, :m, :].reshape(2, n, ho, wo, c_half)
    y = jnp.transpose(y, (1, 0, 4, 2, 3)).reshape(n, c_out, ho, wo)
    return y


def _reference(x, w1, w2):
    """Pure-JAX reference mirroring the PyTorch forward (training-mode BN)."""
    c_half, c_in = w1.shape[0], w1.shape[1]
    o1 = jnp.einsum("nchw,oc->nohw", x[:, :, 0::2, 0::2], w1.reshape(c_half, c_in))
    o2 = jnp.einsum("nchw,oc->nohw", x[:, :, 1::2, 1::2], w2.reshape(c_half, c_in))
    out = jnp.concatenate([o1, o2], axis=1)
    mean = out.mean(axis=(0, 2, 3), keepdims=True)
    var = ((out - mean) ** 2).mean(axis=(0, 2, 3), keepdims=True)
    return (out - mean) / jnp.sqrt(var + _EPS)


if __name__ == "__main__":
    key = jax.random.PRNGKey(0)
    k_x, k_w1, k_w2 = jax.random.split(key, 3)

    N, C_in, H, W = 2, 4, 16, 16
    C_out = 4
    C_half = C_out // 2

    x = jax.random.normal(k_x, (N, C_in, H, W), dtype=jnp.float32)
    # conv weights with nn.Conv2d(C_in, C_out//2, 1, stride=2, bias=False) shapes
    w1 = jax.random.normal(k_w1, (C_half, C_in, 1, 1), dtype=jnp.float32) * 0.1
    w2 = jax.random.normal(k_w2, (C_half, C_in, 1, 1), dtype=jnp.float32) * 0.1

    ref = _reference(x, w1, w2)

    # single-tile path (M fits in one tile)
    out = factorized_reduce(x, w1, w2)
    out = jax.block_until_ready(out)
    assert out.shape == (N, C_out, H // 2, W // 2), out.shape
    assert jnp.allclose(out, ref, atol=2e-4, rtol=2e-4), float(
        jnp.max(jnp.abs(out - ref)))

    # multi-tile path (exercises the stats accumulator across the M grid axis)
    out2 = factorized_reduce(x, w1, w2, tm=32)
    out2 = jax.block_until_ready(out2)
    assert jnp.allclose(out2, ref, atol=2e-4, rtol=2e-4), float(
        jnp.max(jnp.abs(out2 - ref)))

    print("KERNEL_OK")
</pallas_src>

<mosaic_0001>
module attributes {stable_mosaic.version = 11 : i64} {
  func.func @_phase2_kernel(%arg0: i32, %arg1: i32, %arg2: memref<1x128x2xf32, #tpu.memory_space<vmem>>, %arg3: memref<1x2x2xf32, #tpu.memory_space<vmem>>, %arg4: memref<1x128x2xf32, #tpu.memory_space<vmem>>) attributes {dimension_semantics = [#tpu.dimension_semantics<parallel>, #tpu.dimension_semantics<parallel>], iteration_bounds = array<i64: 2, 1>, scalar_prefetch = 0 : i64, scratch_operands = 0 : i64, tpu.core_type = #tpu.core_type<tc>, window_params = [{transform_indices = @transform_0, window_bounds = array<i64: 1, 128, 2>}, {transform_indices = @transform_1, window_bounds = array<i64: 1, 2, 2>}, {transform_indices = @transform_2, window_bounds = array<i64: 1, 128, 2>}]} {
    %c0 = arith.constant 0 : index
    %c0_0 = arith.constant 0 : index
    %c0_1 = arith.constant 0 : index
    %0 = vector.load %arg3[%c0, %c0_0, %c0_1] : memref<1x2x2xf32, #tpu.memory_space<vmem>>, vector<1x2x2xf32>
    %1 = vector.shape_cast %0 : vector<1x2x2xf32> to vector<2x2xf32>
    %2 = vector.extract_strided_slice %1 {offsets = [0, 0], sizes = [1, 2], strides = [1, 1]} : vector<2x2xf32> to vector<1x2xf32>
    %cst = arith.constant 7.812500e-03 : f32
    %3 = vector.broadcast %cst : f32 to vector<1x2xf32>
    %4 = arith.mulf %2, %3 : vector<1x2xf32>
    %5 = vector.extract_strided_slice %1 {offsets = [1, 0], sizes = [1, 2], strides = [1, 1]} : vector<2x2xf32> to vector<1x2xf32>
    %cst_2 = arith.constant 7.812500e-03 : f32
    %6 = vector.broadcast %cst_2 : f32 to vector<1x2xf32>
    %7 = arith.mulf %5, %6 : vector<1x2xf32>
    %8 = arith.mulf %4, %4 : vector<1x2xf32>
    %9 = arith.subf %7, %8 : vector<1x2xf32>
    %cst_3 = arith.constant 9.99999974E-6 : f32
    %10 = vector.broadcast %cst_3 : f32 to vector<1x2xf32>
    %11 = arith.addf %9, %10 : vector<1x2xf32>
    %12 = math.rsqrt %11 : vector<1x2xf32>
    %c0_4 = arith.constant 0 : index
    %c0_5 = arith.constant 0 : index
    %c0_6 = arith.constant 0 : index
    %13 = vector.load %arg2[%c0_4, %c0_5, %c0_6] : memref<1x128x2xf32, #tpu.memory_space<vmem>>, vector<1x128x2xf32>
    %14 = vector.shape_cast %13 : vector<1x128x2xf32> to vector<128x2xf32>
    %15 = vector.broadcast %4 : vector<1x2xf32> to vector<128x2xf32>
    %16 = arith.subf %14, %15 : vector<128x2xf32>
    %17 = vector.broadcast %12 : vector<1x2xf32> to vector<128x2xf32>
    %18 = arith.mulf %16, %17 : vector<128x2xf32>
    %c0_7 = arith.constant 0 : index
    %c0_8 = arith.constant 0 : index
    %c0_9 = arith.constant 0 : index
    %19 = vector.load %arg4[%c0_7, %c0_8, %c0_9] : memref<1x128x2xf32, #tpu.memory_space<vmem>>, vector<1x128x2xf32>
    %20 = vector.shape_cast %19 : vector<1x128x2xf32> to vector<128x2xf32>
    %21 = vector.shape_cast %18 : vector<128x2xf32> to vector<1x128x2xf32>
    tpu.vector_store %arg4[%c0_7, %c0_8, %c0_9], %21 {strides = array<i32>} : memref<1x128x2xf32, #tpu.memory_space<vmem>>, vector<1x128x2xf32>,
    return
  }
  func.func @transform_0(%arg0: i32, %arg1: i32) -> (i32, i32, i32) {
    %c0_i32 = arith.constant 0 : i32
    %c0_i32_0 = arith.constant 0 : i32
    return %arg0, %arg1, %c0_i32 : i32, i32, i32
  }
  func.func @transform_1(%arg0: i32, %arg1: i32) -> (i32, i32, i32) {
    %c0_i32 = arith.constant 0 : i32
    %c0_i32_0 = arith.constant 0 : i32
    %c0_i32_1 = arith.constant 0 : i32
    return %arg0, %c0_i32, %c0_i32_0 : i32, i32, i32
  }
  func.func @transform_2(%arg0: i32, %arg1: i32) -> (i32, i32, i32) {
    %c0_i32 = arith.constant 0 : i32
    %c0_i32_0 = arith.constant 0 : i32
    return %arg0, %arg1, %c0_i32 : i32, i32, i32
  }
}

module attributes {stable_mosaic.version = 11 : i64} {
  func.func @_phase1_kernel(%arg0: i32, %arg1: i32, %arg2: memref<1x128x4xf32, #tpu.memory_space<vmem>>, %arg3: memref<1x4x2xf32, #tpu.memory_space<vmem>>, %arg4: memref<1x128x2xf32, #tpu.memory_space<vmem>>, %arg5: memref<1x2x2xf32, #tpu.memory_space<vmem>>) attributes {dimension_semantics = [#tpu.dimension_semantics<parallel>, #tpu.dimension_semantics<arbitrary>], iteration_bounds = array<i64: 2, 1>, scalar_prefetch = 0 : i64, scratch_operands = 0 : i64, tpu.core_type = #tpu.core_type<tc>, window_params = [{transform_indices = @transform_0, window_bounds = array<i64: 1, 128, 4>}, {transform_indices = @transform_1, window_bounds = array<i64: 1, 4, 2>}, {transform_indices = @transform_2, window_bounds = array<i64: 1, 128, 2>}, {transform_indices = @transform_3, window_bounds = array<i64: 1, 2, 2>}]} {
    %c0_i32 = arith.constant 0 : i32
    %0 = arith.cmpi eq, %arg1, %c0_i32 : i32
    %1 = arith.extui %0 : i1 to i32
    %c0_i32_0 = arith.constant 0 : i32
    %2 = arith.cmpi ne, %1, %c0_i32_0 : i32
    scf.if %2 {
      %cst_22 = arith.constant 0.000000e+00 : f32
      %28 = vector.broadcast %cst_22 : f32 to vector<2x2xf32>
      %c0_23 = arith.constant 0 : index
      %c0_24 = arith.constant 0 : index
      %c0_25 = arith.constant 0 : index
      %29 = vector.load %arg5[%c0_23, %c0_24, %c0_25] : memref<1x2x2xf32, #tpu.memory_space<vmem>>, vector<1x2x2xf32>
      %30 = vector.shape_cast %29 : vector<1x2x2xf32> to vector<2x2xf32>
      %31 = vector.shape_cast %28 : vector<2x2xf32> to vector<1x2x2xf32>
      tpu.vector_store %arg5[%c0_23, %c0_24, %c0_25], %31 {strides = array<i32>} : memref<1x2x2xf32, #tpu.memory_space<vmem>>, vector<1x2x2xf32>,
    } else {
    }
    %c0 = arith.constant 0 : index
    %c0_1 = arith.constant 0 : index
    %c0_2 = arith.constant 0 : index
    %3 = vector.load %arg2[%c0, %c0_1, %c0_2] : memref<1x128x4xf32, #tpu.memory_space<vmem>>, vector<1x128x4xf32>
    %4 = vector.shape_cast %3 : vector<1x128x4xf32> to vector<128x4xf32>
    %c0_3 = arith.constant 0 : index
    %c0_4 = arith.constant 0 : index
    %c0_5 = arith.constant 0 : index
    %5 = vector.load %arg3[%c0_3, %c0_4, %c0_5] : memref<1x4x2xf32, #tpu.memory_space<vmem>>, vector<1x4x2xf32>
    %6 = vector.shape_cast %5 : vector<1x4x2xf32> to vector<4x2xf32>
    %cst = arith.constant dense<0.000000e+00> : vector<128x2xf32>
    %7 = tpu.matmul %4, %6, %cst {dimension_numbers = #tpu.dot_dimension_numbers<[1], [0], [0], [1], [0, 0, 1, 1], [], []>} : vector<128x4xf32>, vector<4x2xf32>, vector<128x2xf32> -> vector<128x2xf32>
    %c0_6 = arith.constant 0 : index
    %c0_7 = arith.constant 0 : index
    %c0_8 = arith.constant 0 : index
    %8 = vector.load %arg4[%c0_6, %c0_7, %c0_8] : memref<1x128x2xf32, #tpu.memory_space<vmem>>, vector<1x128x2xf32>
    %9 = vector.shape_cast %8 : vector<1x128x2xf32> to vector<128x2xf32>
    %10 = vector.shape_cast %7 : vector<128x2xf32> to vector<1x128x2xf32>
    tpu.vector_store %arg4[%c0_6, %c0_7, %c0_8], %10 {strides = array<i32>} : memref<1x128x2xf32, #tpu.memory_space<vmem>>, vector<1x128x2xf32>,
    %c0_9 = arith.constant 0 : index
    %c0_10 = arith.constant 0 : index
    %c0_11 = arith.constant 0 : index
    %11 = vector.load %arg5[%c0_9, %c0_10, %c0_11] : memref<1x2x2xf32, #tpu.memory_space<vmem>>, vector<1x1x2xf32>
    %12 = vector.shape_cast %11 : vector<1x1x2xf32> to vector<1x2xf32>
    %cst_12 = arith.constant dense<0.000000e+00> : vector<2xf32>
    %13 = vector.multi_reduction <add>, %7, %cst_12 [0] : vector<128x2xf32> to vector<2xf32>
    %14 = vector.shape_cast %13 : vector<2xf32> to vector<1x2xf32>
    %15 = arith.addf %12, %14 : vector<1x2xf32>
    %c0_13 = arith.constant 0 : index
    %c0_14 = arith.constant 0 : index
    %c0_15 = arith.constant 0 : index
    %16 = vector.load %arg5[%c0_13, %c0_14, %c0_15] : memref<1x2x2xf32, #tpu.memory_space<vmem>>, vector<1x1x2xf32>
    %17 = vector.shape_cast %16 : vector<1x1x2xf32> to vector<1x2xf32>
    %18 = vector.shape_cast %15 : vector<1x2xf32> to vector<1x1x2xf32>
    tpu.vector_store %arg5[%c0_13, %c0_14, %c0_15], %18 {strides = array<i32>} : memref<1x2x2xf32, #tpu.memory_space<vmem>>, vector<1x1x2xf32>,
    %c0_16 = arith.constant 0 : index
    %c1 = arith.constant 1 : index
    %c0_17 = arith.constant 0 : index
    %19 = vector.load %arg5[%c0_16, %c1, %c0_17] : memref<1x2x2xf32, #tpu.memory_space<vmem>>, vector<1x1x2xf32>
    %20 = vector.shape_cast %19 : vector<1x1x2xf32> to vector<1x2xf32>
    %21 = arith.mulf %7, %7 : vector<128x2xf32>
    %cst_18 = arith.constant dense<0.000000e+00> : vector<2xf32>
    %22 = vector.multi_reduction <add>, %21, %cst_18 [0] : vector<128x2xf32> to vector<2xf32>
    %23 = vector.shape_cast %22 : vector<2xf32> to vector<1x2xf32>
    %24 = arith.addf %20, %23 : vector<1x2xf32>
    %c0_19 = arith.constant 0 : index
    %c1_20 = arith.constant 1 : index
    %c0_21 = arith.constant 0 : index
    %25 = vector.load %arg5[%c0_19, %c1_20, %c0_21] : memref<1x2x2xf32, #tpu.memory_space<vmem>>, vector<1x1x2xf32>
    %26 = vector.shape_cast %25 : vector<1x1x2xf32> to vector<1x2xf32>
    %27 = vector.shape_cast %24 : vector<1x2xf32> to vector<1x1x2xf32>
    tpu.vector_store %arg5[%c0_19, %c1_20, %c0_21], %27 {strides = array<i32>} : memref<1x2x2xf32, #tpu.memory_space<vmem>>, vector<1x1x2xf32>,
    return
  }
  func.func @transform_0(%arg0: i32, %arg1: i32) -> (i32, i32, i32) {
    %c0_i32 = arith.constant 0 : i32
    %c0_i32_0 = arith.constant 0 : i32
    return %arg0, %arg1, %c0_i32 : i32, i32, i32
  }
  func.func @transform_1(%arg0: i32, %arg1: i32) -> (i32, i32, i32) {
    %c0_i32 = arith.constant 0 : i32
    %c0_i32_0 = arith.constant 0 : i32
    %c0_i32_1 = arith.constant 0 : i32
    return %arg0, %c0_i32, %c0_i32_0 : i32, i32, i32
  }
  func.func @transform_2(%arg0: i32, %arg1: i32) -> (i32, i32, i32) {
    %c0_i32 = arith.constant 0 : i32
    %c0_i32_0 = arith.constant 0 : i32
    return %arg0, %arg1, %c0_i32 : i32, i32, i32
  }
  func.func @transform_3(%arg0: i32, %arg1: i32) -> (i32, i32, i32) {
    %c0_i32 = arith.constant 0 : i32
    %c0_i32_0 = arith.constant 0 : i32
    %c0_i32_1 = arith.constant 0 : i32
    return %arg0, %c0_i32, %c0_i32_0 : i32, i32, i32
  }
}

</mosaic_0001>

<llo_original>
// kernel: factorized_reduce.3
$region0: #{factorized_reduce.3}
  #allocation0 [shape = 'u32[]', space=smem, size = 0x4, offset = 0x4, fixed_abs, tag = 'smem constant byte address 0x4 - core index']
  #allocation1 [shape = 'u32[72,128]{1,0:T(1,128)}', space=vmem, size = 0x9000, scoped, tag = 'internal scratch']
  %s0 = inlined_call_operand.vmem [shape: f32[2,128,2], index: 0, kind: input, shape index: {}]
  %s1 = inlined_call_operand.vmem [shape: f32[2,2,2], index: 1, kind: input, shape index: {}]
  %s2 = inlined_call_operand.vmem [shape: f32[2,128,2], index: 2, kind: output, shape index: {}]
  %s3 = sld [smem:[#allocation0]]
  $region41: #{factorized_reduce.3} parent=0
    _
  %s5 = ssub.s32 1, %s3
  %s6 = scalar_select 0, %s5, %s3
  loop: start=0, step=1, limit=4
  $region2: #{factorized_reduce.3} parent=0 // loop_pre_header
    _
  $region3: #{factorized_reduce.3} parent=0 // loop_header
    %s8 = sphi 0, %s12
    %p9 = scmp.ge.s32.totalorder %s8, 4
    %s15 = sphi 0, %s27
    %s16 = sphi 0, %s23
    %s17 = sphi 0, %s15
    %s18 = sphi 0, %s16
    %s19 = sphi 0, %s17
    %s20 = sphi 0, %s18
    %s32 = sphi 0, %s34
    %s35 = sphi 0, %s32
    %s36 = sphi 0, %s35
    %s52 = sphi 0, %s36
    %s58 = sphi 0, %s60
    %s61 = sphi 0, %s58
    %s62 = sphi 0, %s61
    %s78 = sphi 0, %s62
    %s86 = sphi 0, %s88
    %s89 = sphi 0, %s86
    %s90 = sphi 0, %s89
    %s106 = sphi 0, %s90
  $region4: #{factorized_reduce.3} parent=0 // loop_header_branch
    %11 = sbr.rel (%p9) target = $region8
  $region5: #{factorized_reduce.3} parent=0 // loop_body
    %s13 = ssub.s32 %s8, 1
    %s14 = ssub.s32 %s8, 2
    %s21 = sadd.s32 1, %s16
    %p22 = scmp.ge.s32.totalorder %s21, 1
    %s23 = scalar_select %p22, 0, %s21
    %s24 = sadd.s32 1, %s15
    %s25 = scalar_select %p22, %s24, %s15
    %p26 = scmp.ge.s32.totalorder %s25, 2
    %s27 = scalar_select %p26, 0, %s25
    %s28 = ssub.s32 %s15, %s27
    %s29 = ssub.s32 %s16, %s23
    %s30 = sor.u32 %s28, %s29
    %p31 = scmp.eq.s32.totalorder %s30, 0
    %s33 = sadd.s32 %s32, 1
    %s34 = scalar_select %p31, %s32, %s33
    %p37 = pneg %p31
    %p38 = scmp.eq.s32.totalorder %s8, 1
    %p39 = por %p37, %p38
    %p40 = scmp.ne.s32.totalorder %s32, %s35
    %p41 = scmp.eq.s32.totalorder %s8, 0
    %p42 = por %p40, %p41
    %p43 = scmp.ne.s32.totalorder %s32, %s35
    %p44 = scmp.eq.s32.totalorder %s13, 1
    %p45 = por %p43, %p44
    %p46 = scmp.ne.s32.totalorder %s35, %s36
    %p47 = scmp.eq.s32.totalorder %s13, 0
    %p48 = por %p46, %p47
    %p49 = scmp.ne.s32.totalorder %s35, %s36
    %p50 = scmp.eq.s32.totalorder %s14, 1
    %p51 = por %p49, %p50
    %p53 = scmp.ne.s32.totalorder %s36, %s52
    %p54 = scmp.eq.s32.totalorder %s14, 0
    %p55 = por %p53, %p54
    %s56 = ssub.s32 %s15, %s27
    %p57 = scmp.eq.s32.totalorder %s56, 0
    %s59 = sadd.s32 %s58, 1
    %s60 = scalar_select %p57, %s58, %s59
    %p63 = pneg %p57
    %p64 = scmp.eq.s32.totalorder %s8, 1
    %p65 = por %p63, %p64
    %p66 = scmp.ne.s32.totalorder %s58, %s61
    %p67 = scmp.eq.s32.totalorder %s8, 0
    %p68 = por %p66, %p67
    %p69 = scmp.ne.s32.totalorder %s58, %s61
    %p70 = scmp.eq.s32.totalorder %s13, 1
    %p71 = por %p69, %p70
    %p72 = scmp.ne.s32.totalorder %s61, %s62
    %p73 = scmp.eq.s32.totalorder %s13, 0
    %p74 = por %p72, %p73
    %p75 = scmp.ne.s32.totalorder %s61, %s62
    %p76 = scmp.eq.s32.totalorder %s14, 1
    %p77 = por %p75, %p76
    %p79 = scmp.ne.s32.totalorder %s62, %s78
    %p80 = scmp.eq.s32.totalorder %s14, 0
    %p81 = por %p79, %p80
    %s82 = ssub.s32 %s15, %s27
    %s83 = ssub.s32 %s16, %s23
    %s84 = sor.u32 %s82, %s83
    %p85 = scmp.eq.s32.totalorder %s84, 0
    %s87 = sadd.s32 %s86, 1
    %s88 = scalar_select %p85, %s86, %s87
    %p91 = pneg %p85
    %p92 = scmp.eq.s32.totalorder %s8, 1
    %p93 = por %p91, %p92
    %p94 = scmp.ne.s32.totalorder %s86, %s89
    %p95 = scmp.eq.s32.totalorder %s8, 0
    %p96 = por %p94, %p95
    %p97 = scmp.ne.s32.totalorder %s86, %s89
    %p98 = scmp.eq.s32.totalorder %s13, 1
    %p99 = por %p97, %p98
    %p100 = scmp.ne.s32.totalorder %s89, %s90
    %p101 = scmp.eq.s32.totalorder %s13, 0
    %p102 = por %p100, %p101
    %p103 = scmp.ne.s32.totalorder %s89, %s90
    %p104 = scmp.eq.s32.totalorder %s14, 1
    %p105 = por %p103, %p104
    %p107 = scmp.ne.s32.totalorder %s90, %s106
    %p108 = scmp.eq.s32.totalorder %s14, 0
    %p109 = por %p107, %p108
    %p110 = scmp.le.s32.totalorder 1, %s8
    %p111 = scmp.lt.s32.totalorder %s8, 3
    %p112 = pnand %p110, %p111
    %p113 = pneg %p112
    // Predicated region
    $region9: #{factorized_reduce.3} parent=5 // pred_check
      _
    $region10: #{factorized_reduce.3} parent=5 // pred_check_branch
      %115 = sbr.rel (%p112) target = $region12
    $region11: #{factorized_reduce.3} parent=5 // pred_region
      %s116 = ssub.s32 %s8, 1
    $region12: #{factorized_reduce.3} parent=5 // pred_fallthru
      _
    %p117 = scmp.lt.s32.totalorder %s8, 2
    // Predicated region
    $region13: #{factorized_reduce.3} parent=5 // pred_check
      %p118 = pneg %p117
    $region14: #{factorized_reduce.3} parent=5 // pred_check_branch
      %120 = sbr.rel (%p118) target = $region16
    $region15: #{factorized_reduce.3} parent=5 // pred_region
      // Predicated region
      $region17: #{factorized_reduce.3} parent=15 // pred_check
        %p121 = pneg %p42
      $region18: #{factorized_reduce.3} parent=15 // pred_check_branch
        %123 = sbr.rel (%p121) target = $region20
      $region19: #{factorized_reduce.3} parent=15 // pred_region
        %s124 = smul.u32 16, %s16
        %p125 = scmp.lt.s32.totalorder %s15, 1
        %s126 = scalar_select %p125, %s15, 1
        %p127 = scmp.lt.s32.totalorder %s124, 15
        %s128 = scalar_select %p127, %s124, 15
        %s129 = smul.addr %s126, 16
        %s130 = sadd.s32 %s128, %s129
        %s131 = smul.addr %s130, 8
        %s132 = scalar_lea.vmem %s0, %s131
        %s133 = smul.u32 16, %s16
      $region20: #{factorized_reduce.3} parent=15 // pred_fallthru
        _
      // Predicated region
      $region21: #{factorized_reduce.3} parent=15 // pred_check
        %p134 = pneg %p68
      $region22: #{factorized_reduce.3} parent=15 // pred_check_branch
        %136 = sbr.rel (%p134) target = $region24
      $region23: #{factorized_reduce.3} parent=15 // pred_region
        %p137 = scmp.lt.s32.totalorder %s15, 1
        %s138 = scalar_select %p137, %s15, 1
        %s139 = smul.addr %s138, 2
        %s140 = scalar_lea.vmem %s1, %s139
      $region24: #{factorized_reduce.3} parent=15 // pred_fallthru
        _
    $region16: #{factorized_reduce.3} parent=5 // pred_fallthru
      _
    %p141 = scmp.le.s32.totalorder 1, %s8
    %p142 = scmp.lt.s32.totalorder %s8, 3
    %p143 = pnand %p141, %p142
    %p144 = pneg %p143
    // Predicated region
    $region25: #{factorized_reduce.3} parent=5 // pred_check
      _
    $region26: #{factorized_reduce.3} parent=5 // pred_check_branch
      %146 = sbr.rel (%p143) target = $region28
    $region27: #{factorized_reduce.3} parent=5 // pred_region
      %s147 = ssub.s32 %s8, 1
      %s148 = smul.u32 16, %s18
      %p149 = scmp.lt.s32.totalorder %s17, 1
      %s150 = scalar_select %p149, %s17, 1
      %p151 = scmp.lt.s32.totalorder %s148, 15
      %s152 = scalar_select %p151, %s148, 15
      %s153 = smul.addr %s150, 16
      %s154 = sadd.s32 %s152, %s153
      %s155 = smul.addr %s154, 8
      %s156 = scalar_lea.vmem %s0, %s155
      %p157 = pneg %p48
      %p158 = pneg %p45
      %p159 = scmp.lt.s32.totalorder %s17, 1
      %s160 = scalar_select %p159, %s17, 1
      %s161 = smul.addr %s160, 2
      %s162 = scalar_lea.vmem %s1, %s161
      %p163 = pneg %p74
      %p164 = pneg %p71
      %p165 = pneg %p102
      %p166 = pneg %p99
      %s167 = smul.u32 16, %s18
      %p168 = scmp.lt.s32.totalorder %s17, 1
      %s169 = scalar_select %p168, %s17, 1
      %p170 = scmp.lt.s32.totalorder %s167, 15
      %s171 = scalar_select %p170, %s167, 15
      %s172 = smul.addr %s169, 16
      %s173 = sadd.s32 %s171, %s172
      %s174 = smul.addr %s173, 8
      %s175 = scalar_lea.vmem %s2, %s174
      %s176 = smul.u32 16, %s18
      %p177 = scmp.lt.s32.totalorder %s17, 1
      %s178 = scalar_select %p177, %s17, 1
      %p179 = scmp.lt.s32.totalorder %s176, 15
      %s180 = scalar_select %p179, %s176, 15
      %s181 = smul.addr %s178, 16
      %s182 = sadd.s32 %s180, %s181
      %s183 = smul.addr %s182, 8
      %s184 = scalar_lea.vmem %s0, %s183
      %s185 = smul.u32 16, %s18
      %p186 = scmp.lt.s32.totalorder %s17, 1
      %s187 = scalar_select %p186, %s17, 1
      %s188 = smul.addr %s187, 2
      %s189 = scalar_lea.vmem %s1, %s188
      %s190 = smul.u32 16, %s18
      %p191 = scmp.lt.s32.totalorder %s17, 1
      %s192 = scalar_select %p191, %s17, 1
      %p193 = scmp.lt.s32.totalorder %s190, 15
      %s194 = scalar_select %p193, %s190, 15
      %s195 = smul.addr %s192, 16
      %s196 = sadd.s32 %s194, %s195
      %s197 = smul.addr %s196, 8
      %s198 = scalar_lea.vmem %s2, %s197
      %s199 = smul.u32 16, %s18
      %v200 = vld [vmem:[%s189] sm:$0x3]
      %v201 = vmul.f32 %v200, 0.0078125
      %v202 = vmul.f32 %v201, %v201
      %v204 = vrot.slane %v202, 7
      %v206 = vsub.f32 %v201, %v204
      %v207 = vadd.f32 %v206, 1e-05
      %v208 = vrsqrt.pop %v207
      %v209 = vmul.f32 %v208, %v207
      %v210 = vmul.f32 %v209, %v208
      %v211 = vmul.f32 0.5, %v210
      %v212 = vsub.f32 1.5, %v211
      %v213 = vmul.f32 %v208, %v212
      %vm214 = vweird.f32 %v207
      %vm215 = vweird.f32 %v208
      %vm216 = vmor %vm214, %vm215
      %v217 = vsel %vm216, %v208, %v213
      %v218 = vld [vmem:[%s184] sm:$0xff]
      %v219 = vld [vmem:[%s184 + $0x8] sm:$0xff]
      %v220 = vld [vmem:[%s184 + $0x10] sm:$0xff]
      %v221 = vld [vmem:[%s184 + $0x18] sm:$0xff]
      %v222 = vld [vmem:[%s184 + $0x20] sm:$0xff]
      %v223 = vld [vmem:[%s184 + $0x28] sm:$0xff]
      %v224 = vld [vmem:[%s184 + $0x30] sm:$0xff]
      %v225 = vld [vmem:[%s184 + $0x38] sm:$0xff]
      %v226 = vld [vmem:[%s184 + $0x40] sm:$0xff]
      %v227 = vld [vmem:[%s184 + $0x48] sm:$0xff]
      %v228 = vld [vmem:[%s184 + $0x50] sm:$0xff]
      %v229 = vld [vmem:[%s184 + $0x58] sm:$0xff]
      %v230 = vld [vmem:[%s184 + $0x60] sm:$0xff]
      %v231 = vld [vmem:[%s184 + $0x68] sm:$0xff]
      %v232 = vld [vmem:[%s184 + $0x70] sm:$0xff]
      %v233 = vld [vmem:[%s184 + $0x78] sm:$0xff]
      %v234 = vperm.slane %v201, 0
      %v235 = vsub.f32 %v218, %v234
      %v236 = vsub.f32 %v219, %v234
      %v237 = vsub.f32 %v220, %v234
      %v238 = vsub.f32 %v221, %v234
      %v239 = vsub.f32 %v222, %v234
      %v240 = vsub.f32 %v223, %v234
      %v241 = vsub.f32 %v224, %v234
      %v242 = vsub.f32 %v225, %v234
      %v243 = vsub.f32 %v226, %v234
      %v244 = vsub.f32 %v227, %v234
      %v245 = vsub.f32 %v228, %v234
      %v246 = vsub.f32 %v229, %v234
      %v247 = vsub.f32 %v230, %v234
      %v248 = vsub.f32 %v231, %v234
      %v249 = vsub.f32 %v232, %v234
      %v250 = vsub.f32 %v233, %v234
      %v251 = vperm.slane %v217, 1
      %v252 = vmul.f32 %v235, %v251
      %v253 = vmul.f32 %v236, %v251
      %v254 = vmul.f32 %v237, %v251
      %v255 = vmul.f32 %v238, %v251
      %v256 = vmul.f32 %v239, %v251
      %v257 = vmul.f32 %v240, %v251
      %v258 = vmul.f32 %v241, %v251
      %v259 = vmul.f32 %v242, %v251
      %v260 = vmul.f32 %v243, %v251
      %v261 = vmul.f32 %v244, %v251
      %v262 = vmul.f32 %v245, %v251
      %v263 = vmul.f32 %v246, %v251
      %v264 = vmul.f32 %v247, %v251
      %v265 = vmul.f32 %v248, %v251
      %v266 = vmul.f32 %v249, %v251
      %v267 = vmul.f32 %v250, %v251
      %vm268 = vcmask 15360
      %269 = vst.msk [vmem:[%s198] sm:$0xff] %vm268, %v252
      %270 = vst.msk [vmem:[%s198 + $0x8] sm:$0xff] %vm268, %v253
      %271 = vst.msk [vmem:[%s198 + $0x10] sm:$0xff] %vm268, %v254
      %272 = vst.msk [vmem:[%s198 + $0x18] sm:$0xff] %vm268, %v255
      %273 = vst.msk [vmem:[%s198 + $0x20] sm:$0xff] %vm268, %v256
      %274 = vst.msk [vmem:[%s198 + $0x28] sm:$0xff] %vm268, %v257
      %275 = vst.msk [vmem:[%s198 + $0x30] sm:$0xff] %vm268, %v258
      %276 = vst.msk [vmem:[%s198 + $0x38] sm:$0xff] %vm268, %v259
      %277 = vst.msk [vmem:[%s198 + $0x40] sm:$0xff] %vm268, %v260
      %278 = vst.msk [vmem:[%s198 + $0x48] sm:$0xff] %vm268, %v261
      %279 = vst.msk [vmem:[%s198 + $0x50] sm:$0xff] %vm268, %v262
      %280 = vst.msk [vmem:[%s198 + $0x58] sm:$0xff] %vm268, %v263
      %281 = vst.msk [vmem:[%s198 + $0x60] sm:$0xff] %vm268, %v264
      %282 = vst.msk [vmem:[%s198 + $0x68] sm:$0xff] %vm268, %v265
      %283 = vst.msk [vmem:[%s198 + $0x70] sm:$0xff] %vm268, %v266
      %284 = vst.msk [vmem:[%s198 + $0x78] sm:$0xff] %vm268, %v267
      %s285 = smul.u32 16, %s18
      %p286 = scmp.lt.s32.totalorder %s17, 1
      %s287 = scalar_select %p286, %s17, 1
      %p288 = scmp.lt.s32.totalorder %s285, 15
      %s289 = scalar_select %p288, %s285, 15
      %s290 = smul.addr %s287, 16
      %s291 = sadd.s32 %s289, %s290
      %s292 = smul.addr %s291, 8
      %s293 = scalar_lea.vmem %s2, %s292
      // Predicated region
      $region29: #{factorized_reduce.3} parent=27 // pred_check
        %p294 = pneg %p99
      $region30: #{factorized_reduce.3} parent=27 // pred_check_branch
        %296 = sbr.rel (%p294) target = $region32
      $region31: #{factorized_reduce.3} parent=27 // pred_region
        %s297 = smul.u32 16, %s18
      $region32: #{factorized_reduce.3} parent=27 // pred_fallthru
        _
    $region28: #{factorized_reduce.3} parent=5 // pred_fallthru
      _
    %p298 = scmp.le.s32.totalorder 2, %s8
    // Predicated region
    $region33: #{factorized_reduce.3} parent=5 // pred_check
      %p299 = pneg %p298
    $region34: #{factorized_reduce.3} parent=5 // pred_check_branch
      %301 = sbr.rel (%p299) target = $region36
    $region35: #{factorized_reduce.3} parent=5 // pred_region
      %s302 = ssub.s32 %s8, 2
      // Predicated region
      $region37: #{factorized_reduce.3} parent=35 // pred_check
        %p303 = pneg %p105
      $region38: #{factorized_reduce.3} parent=35 // pred_check_branch
        %305 = sbr.rel (%p303) target = $region40
      $region39: #{factorized_reduce.3} parent=35 // pred_region
        %s306 = smul.u32 16, %s20
        %p307 = scmp.lt.s32.totalorder %s19, 1
        %s308 = scalar_select %p307, %s19, 1
        %p309 = scmp.lt.s32.totalorder %s306, 15
        %s310 = scalar_select %p309, %s306, 15
        %s311 = smul.addr %s308, 16
        %s312 = sadd.s32 %s310, %s311
        %s313 = smul.addr %s312, 8
        %s314 = scalar_lea.vmem %s2, %s313
      $region40: #{factorized_reduce.3} parent=35 // pred_fallthru
        _
    $region36: #{factorized_reduce.3} parent=5 // pred_fallthru
      _
  $region6: #{factorized_reduce.3} parent=0 // loop_footer
    %s12 = sadd.s32 1, %s8
  $region7: #{factorized_reduce.3} parent=0 // loop_footer_branch
    %7 = sbr.rel target = $region3
  $region8: #{factorized_reduce.3} parent=0 // loop_exit
    _

// kernel: factorized_reduce.2
$region0: #{factorized_reduce.2}
  #allocation0 [shape = 'u32[]', space=smem, size = 0x4, offset = 0x4, fixed_abs, tag = 'smem constant byte address 0x4 - core index']
  #allocation1 [shape = 'u32[72,128]{1,0:T(1,128)}', space=vmem, size = 0x9000, scoped, tag = 'internal scratch']
  %s0 = inlined_call_operand.vmem [shape: f32[2,128,4], index: 0, kind: input, shape index: {}]
  %s1 = inlined_call_operand.vmem [shape: f32[2,4,2], index: 1, kind: input, shape index: {}]
  %s2 = inlined_call_operand.vmem [shape: f32[2,128,2], index: 2, kind: output, shape index: {0}]
  %s3 = inlined_call_operand.vmem [shape: f32[2,2,2], index: 3, kind: output, shape index: {1}]
  %4 = xla_tuple %s2, %s3
  %s5 = sld [smem:[#allocation0]]
  $region53: #{factorized_reduce.2} parent=0
    _
  %s7 = ssub.s32 1, %s5
  %s8 = scalar_select 0, %s7, %s5
  loop: start=0, step=1, limit=4
  $region2: #{factorized_reduce.2} parent=0 // loop_pre_header
    _
  $region3: #{factorized_reduce.2} parent=0 // loop_header
    %s10 = sphi 0, %s14
    %p11 = scmp.ge.s32.totalorder %s10, 4
    %s17 = sphi 0, %s29
    %s18 = sphi 0, %s25
    %s19 = sphi 0, %s17
    %s20 = sphi 0, %s18
    %s21 = sphi 0, %s19
    %s22 = sphi 0, %s20
    %s34 = sphi 0, %s36
    %s37 = sphi 0, %s34
    %s38 = sphi 0, %s37
    %s54 = sphi 0, %s38
    %s60 = sphi 0, %s62
    %s63 = sphi 0, %s60
    %s64 = sphi 0, %s63
    %s80 = sphi 0, %s64
    %s88 = sphi 0, %s90
    %s91 = sphi 0, %s88
    %s92 = sphi 0, %s91
    %s108 = sphi 0, %s92
    %s114 = sphi 0, %s116
    %s117 = sphi 0, %s114
    %s118 = sphi 0, %s117
    %s134 = sphi 0, %s118
  $region4: #{factorized_reduce.2} parent=0 // loop_header_branch
    %13 = sbr.rel (%p11) target = $region8
  $region5: #{factorized_reduce.2} parent=0 // loop_body
    %s15 = ssub.s32 %s10, 1
    %s16 = ssub.s32 %s10, 2
    %s23 = sadd.s32 1, %s18
    %p24 = scmp.ge.s32.totalorder %s23, 1
    %s25 = scalar_select %p24, 0, %s23
    %s26 = sadd.s32 1, %s17
    %s27 = scalar_select %p24, %s26, %s17
    %p28 = scmp.ge.s32.totalorder %s27, 2
    %s29 = scalar_select %p28, 0, %s27
    %s30 = ssub.s32 %s17, %s29
    %s31 = ssub.s32 %s18, %s25
    %s32 = sor.u32 %s30, %s31
    %p33 = scmp.eq.s32.totalorder %s32, 0
    %s35 = sadd.s32 %s34, 1
    %s36 = scalar_select %p33, %s34, %s35
    %p39 = pneg %p33
    %p40 = scmp.eq.s32.totalorder %s10, 1
    %p41 = por %p39, %p40
    %p42 = scmp.ne.s32.totalorder %s34, %s37
    %p43 = scmp.eq.s32.totalorder %s10, 0
    %p44 = por %p42, %p43
    %p45 = scmp.ne.s32.totalorder %s34, %s37
    %p46 = scmp.eq.s32.totalorder %s15, 1
    %p47 = por %p45, %p46
    %p48 = scmp.ne.s32.totalorder %s37, %s38
    %p49 = scmp.eq.s32.totalorder %s15, 0
    %p50 = por %p48, %p49
    %p51 = scmp.ne.s32.totalorder %s37, %s38
    %p52 = scmp.eq.s32.totalorder %s16, 1
    %p53 = por %p51, %p52
    %p55 = scmp.ne.s32.totalorder %s38, %s54
    %p56 = scmp.eq.s32.totalorder %s16, 0
    %p57 = por %p55, %p56
    %s58 = ssub.s32 %s17, %s29
    %p59 = scmp.eq.s32.totalorder %s58, 0
    %s61 = sadd.s32 %s60, 1
    %s62 = scalar_select %p59, %s60, %s61
    %p65 = pneg %p59
    %p66 = scmp.eq.s32.totalorder %s10, 1
    %p67 = por %p65, %p66
    %p68 = scmp.ne.s32.totalorder %s60, %s63
    %p69 = scmp.eq.s32.totalorder %s10, 0
    %p70 = por %p68, %p69
    %p71 = scmp.ne.s32.totalorder %s60, %s63
    %p72 = scmp.eq.s32.totalorder %s15, 1
    %p73 = por %p71, %p72
    %p74 = scmp.ne.s32.totalorder %s63, %s64
    %p75 = scmp.eq.s32.totalorder %s15, 0
    %p76 = por %p74, %p75
    %p77 = scmp.ne.s32.totalorder %s63, %s64
    %p78 = scmp.eq.s32.totalorder %s16, 1
    %p79 = por %p77, %p78
    %p81 = scmp.ne.s32.totalorder %s64, %s80
    %p82 = scmp.eq.s32.totalorder %s16, 0
    %p83 = por %p81, %p82
    %s84 = ssub.s32 %s17, %s29
    %s85 = ssub.s32 %s18, %s25
    %s86 = sor.u32 %s84, %s85
    %p87 = scmp.eq.s32.totalorder %s86, 0
    %s89 = sadd.s32 %s88, 1
    %s90 = scalar_select %p87, %s88, %s89
    %p93 = pneg %p87
    %p94 = scmp.eq.s32.totalorder %s10, 1
    %p95 = por %p93, %p94
    %p96 = scmp.ne.s32.totalorder %s88, %s91
    %p97 = scmp.eq.s32.totalorder %s10, 0
    %p98 = por %p96, %p97
    %p99 = scmp.ne.s32.totalorder %s88, %s91
    %p100 = scmp.eq.s32.totalorder %s15, 1
    %p101 = por %p99, %p100
    %p102 = scmp.ne.s32.totalorder %s91, %s92
    %p103 = scmp.eq.s32.totalorder %s15, 0
    %p104 = por %p102, %p103
    %p105 = scmp.ne.s32.totalorder %s91, %s92
    %p106 = scmp.eq.s32.totalorder %s16, 1
    %p107 = por %p105, %p106
    %p109 = scmp.ne.s32.totalorder %s92, %s108
    %p110 = scmp.eq.s32.totalorder %s16, 0
    %p111 = por %p109, %p110
    %s112 = ssub.s32 %s17, %s29
    %p113 = scmp.eq.s32.totalorder %s112, 0
    %s115 = sadd.s32 %s114, 1
    %s116 = scalar_select %p113, %s114, %s115
    %p119 = pneg %p113
    %p120 = scmp.eq.s32.totalorder %s10, 1
    %p121 = por %p119, %p120
    %p122 = scmp.ne.s32.totalorder %s114, %s117
    %p123 = scmp.eq.s32.totalorder %s10, 0
    %p124 = por %p122, %p123
    %p125 = scmp.ne.s32.totalorder %s114, %s117
    %p126 = scmp.eq.s32.totalorder %s15, 1
    %p127 = por %p125, %p126
    %p128 = scmp.ne.s32.totalorder %s117, %s118
    %p129 = scmp.eq.s32.totalorder %s15, 0
    %p130 = por %p128, %p129
    %p131 = scmp.ne.s32.totalorder %s117, %s118
    %p132 = scmp.eq.s32.totalorder %s16, 1
    %p133 = por %p131, %p132
    %p135 = scmp.ne.s32.totalorder %s118, %s134
    %p136 = scmp.eq.s32.totalorder %s16, 0
    %p137 = por %p135, %p136
    %p138 = scmp.le.s32.totalorder 1, %s10
    %p139 = scmp.lt.s32.totalorder %s10, 3
    %p140 = pnand %p138, %p139
    %p141 = pneg %p140
    // Predicated region
    $region9: #{factorized_reduce.2} parent=5 // pred_check
      _
    $region10: #{factorized_reduce.2} parent=5 // pred_check_branch
      %143 = sbr.rel (%p140) target = $region12
    $region11: #{factorized_reduce.2} parent=5 // pred_region
      %s144 = ssub.s32 %s10, 1
    $region12: #{factorized_reduce.2} parent=5 // pred_fallthru
      _
    %p145 = scmp.lt.s32.totalorder %s10, 2
    // Predicated region
    $region13: #{factorized_reduce.2} parent=5 // pred_check
      %p146 = pneg %p145
    $region14: #{factorized_reduce.2} parent=5 // pred_check_branch
      %148 = sbr.rel (%p146) target = $region16
    $region15: #{factorized_reduce.2} parent=5 // pred_region
      // Predicated region
      $region17: #{factorized_reduce.2} parent=15 // pred_check
        %p149 = pneg %p44
      $region18: #{factorized_reduce.2} parent=15 // pred_check_branch
        %151 = sbr.rel (%p149) target = $region20
      $region19: #{factorized_reduce.2} parent=15 // pred_region
        %s152 = smul.u32 16, %s18
        %p153 = scmp.lt.s32.totalorder %s17, 1
        %s154 = scalar_select %p153, %s17, 1
        %p155 = scmp.lt.s32.totalorder %s152, 15
        %s156 = scalar_select %p155, %s152, 15
        %s157 = smul.addr %s154, 16
        %s158 = sadd.s32 %s156, %s157
        %s159 = smul.addr %s158, 8
        %s160 = scalar_lea.vmem %s0, %s159
        %s161 = smul.u32 16, %s18
      $region20: #{factorized_reduce.2} parent=15 // pred_fallthru
        _
      // Predicated region
      $region21: #{factorized_reduce.2} parent=15 // pred_check
        %p162 = pneg %p70
      $region22: #{factorized_reduce.2} parent=15 // pred_check_branch
        %164 = sbr.rel (%p162) target = $region24
      $region23: #{factorized_reduce.2} parent=15 // pred_region
        %p165 = scmp.lt.s32.totalorder %s17, 1
        %s166 = scalar_select %p165, %s17, 1
        %s167 = smul.addr %s166, 4
        %s168 = scalar_lea.vmem %s1, %s167
      $region24: #{factorized_reduce.2} parent=15 // pred_fallthru
        _
    $region16: #{factorized_reduce.2} parent=5 // pred_fallthru
      _
    %p169 = scmp.le.s32.totalorder 1, %s10
    %p170 = scmp.lt.s32.totalorder %s10, 3
    %p171 = pnand %p169, %p170
    %p172 = pneg %p171
    // Predicated region
    $region25: #{factorized_reduce.2} parent=5 // pred_check
      _
    $region26: #{factorized_reduce.2} parent=5 // pred_check_branch
      %174 = sbr.rel (%p171) target = $region28
    $region27: #{factorized_reduce.2} parent=5 // pred_region
      %s175 = ssub.s32 %s10, 1
      %s176 = smul.u32 16, %s20
      %p177 = scmp.lt.s32.totalorder %s19, 1
      %s178 = scalar_select %p177, %s19, 1
      %p179 = scmp.lt.s32.totalorder %s176, 15
      %s180 = scalar_select %p179, %s176, 15
      %s181 = smul.addr %s178, 16
      %s182 = sadd.s32 %s180, %s181
      %s183 = smul.addr %s182, 8
      %s184 = scalar_lea.vmem %s0, %s183
      %p185 = pneg %p50
      %p186 = pneg %p47
      %p187 = scmp.lt.s32.totalorder %s19, 1
      %s188 = scalar_select %p187, %s19, 1
      %s189 = smul.addr %s188, 4
      %s190 = scalar_lea.vmem %s1, %s189
      %p191 = pneg %p76
      %p192 = pneg %p73
      %p193 = pneg %p104
      %p194 = pneg %p101
      %s195 = smul.u32 16, %s20
      %p196 = scmp.lt.s32.totalorder %s19, 1
      %s197 = scalar_select %p196, %s19, 1
      %p198 = scmp.lt.s32.totalorder %s195, 15
      %s199 = scalar_select %p198, %s195, 15
      %s200 = smul.addr %s197, 16
      %s201 = sadd.s32 %s199, %s200
      %s202 = smul.addr %s201, 8
      %s203 = scalar_lea.vmem %s2, %s202
      %p204 = pneg %p130
      %p205 = pneg %p127
      %p206 = scmp.lt.s32.totalorder %s19, 1
      %s207 = scalar_select %p206, %s19, 1
      %s208 = smul.addr %s207, 2
      %s209 = scalar_lea.vmem %s3, %s208
      %s210 = smul.u32 16, %s20
      %p211 = scmp.lt.s32.totalorder %s19, 1
      %s212 = scalar_select %p211, %s19, 1
      %p213 = scmp.lt.s32.totalorder %s210, 15
      %s214 = scalar_select %p213, %s210, 15
      %s215 = smul.addr %s212, 16
      %s216 = sadd.s32 %s214, %s215
      %s217 = smul.addr %s216, 8
      %s218 = scalar_lea.vmem %s0, %s217
      %s219 = smul.u32 16, %s20
      %p220 = scmp.lt.s32.totalorder %s19, 1
      %s221 = scalar_select %p220, %s19, 1
      %s222 = smul.addr %s221, 4
      %s223 = scalar_lea.vmem %s1, %s222
      %s224 = smul.u32 16, %s20
      %p225 = scmp.lt.s32.totalorder %s19, 1
      %s226 = scalar_select %p225, %s19, 1
      %p227 = scmp.lt.s32.totalorder %s224, 15
      %s228 = scalar_select %p227, %s224, 15
      %s229 = smul.addr %s226, 16
      %s230 = sadd.s32 %s228, %s229
      %s231 = smul.addr %s230, 8
      %s232 = scalar_lea.vmem %s2, %s231
      %s233 = smul.u32 16, %s20
      %p234 = scmp.lt.s32.totalorder %s19, 1
      %s235 = scalar_select %p234, %s19, 1
      %s236 = smul.addr %s235, 2
      %s237 = scalar_lea.vmem %s3, %s236
      %p238 = scmp.eq.s32.totalorder %s20, 0
      // Predicated region
      $region29: #{factorized_reduce.2} parent=27 // pred_check
        %p239 = pneg %p238
      $region30: #{factorized_reduce.2} parent=27 // pred_check_branch
        %241 = sbr.rel (%p239) target = $region32
      $region31: #{factorized_reduce.2} parent=27 // pred_region
        %vm242 = vcmask 9216
        %243 = vst.msk [vmem:[%s237] sm:$0x3] %vm242, 0.0
      $region32: #{factorized_reduce.2} parent=27 // pred_fallthru
        _
      %v244 = vld [vmem:[%s218] sm:$0xff]
      %v245 = vld [vmem:[%s218 + $0x8] sm:$0xff]
      %v246 = vld [vmem:[%s218 + $0x10] sm:$0xff]
      %v247 = vld [vmem:[%s218 + $0x18] sm:$0xff]
      %v248 = vld [vmem:[%s218 + $0x20] sm:$0xff]
      %v249 = vld [vmem:[%s218 + $0x28] sm:$0xff]
      %v250 = vld [vmem:[%s218 + $0x30] sm:$0xff]
      %v251 = vld [vmem:[%s218 + $0x38] sm:$0xff]
      %v252 = vld [vmem:[%s218 + $0x40] sm:$0xff]
      %v253 = vld [vmem:[%s218 + $0x48] sm:$0xff]
      %v254 = vld [vmem:[%s218 + $0x50] sm:$0xff]
      %v255 = vld [vmem:[%s218 + $0x58] sm:$0xff]
      %v256 = vld [vmem:[%s218 + $0x60] sm:$0xff]
      %v257 = vld [vmem:[%s218 + $0x68] sm:$0xff]
      %v258 = vld [vmem:[%s218 + $0x70] sm:$0xff]
      %v259 = vld [vmem:[%s218 + $0x78] sm:$0xff]
      %v260 = vld [vmem:[%s223] sm:$0xf]
      %vm261 = vcmask 31744
      %v263 = vsel %vm261, %v244, 0
      %v266 = vsel %vm261, %v245, 0
      %v269 = vsel %vm261, %v246, 0
      %v272 = vsel %vm261, %v247, 0
      %v275 = vsel %vm261, %v248, 0
      %v278 = vsel %vm261, %v249, 0
      %v281 = vsel %vm261, %v250, 0
      %v284 = vsel %vm261, %v251, 0
      %v287 = vsel %vm261, %v252, 0
      %v290 = vsel %vm261, %v253, 0
      %v293 = vsel %vm261, %v254, 0
      %v296 = vsel %vm261, %v255, 0
      %v299 = vsel %vm261, %v256, 0
      %v302 = vsel %vm261, %v257, 0
      %v305 = vsel %vm261, %v258, 0
      %v308 = vsel %vm261, %v259, 0
      %vm310 = vcmask 1043456
      %v312 = vsel %vm310, %v260, 0
      %314 = vmatpush.msra.mxu0 0.0
      %315 = vmatpush.msra.mxu0 0.0
      %316 = vmatpush.msra.mxu0 0.0
      %317 = vmatpush.msra.mxu0 0.0
      %318 = vmatpush.msra.mxu0 0.0
      %319 = vmatpush.msra.mxu0 0.0
      %320 = vmatpush.msra.mxu0 0.0
      %321 = vmatpush.msra.mxu0 0.0
      %322 = vmatpush.msra.mxu0 0.0
      %323 = vmatpush.msra.mxu0 0.0
      %324 = vmatpush.msra.mxu0 0.0
      %325 = vmatpush.msra.mxu0 0.0
      %326 = vmatpush.msra.mxu0 0.0
      %327 = vmatpush.msra.mxu0 0.0
      %328 = vmatpush.msra.mxu0 0.0
      %329 = vmatpush.msra.mxu0 %v312
      %330 = vmatmul.f32.gmra.mxu0 %v263
      %v331 = vpop.f32.mrf.mxu0
      %v332 = vadd.f32 0.0, %v331
      %333 = vmatmul.f32.gmra.mxu0 %v266
      %v334 = vpop.f32.mrf.mxu0
      %v335 = vadd.f32 0.0, %v334
      %336 = vmatmul.f32.gmra.mxu0 %v269
      %v337 = vpop.f32.mrf.mxu0
      %v338 = vadd.f32 0.0, %v337
      %339 = vmatmul.f32.gmra.mxu0 %v272
      %v340 = vpop.f32.mrf.mxu0
      %v341 = vadd.f32 0.0, %v340
      %342 = vmatmul.f32.gmra.mxu0 %v275
      %v343 = vpop.f32.mrf.mxu0
      %v344 = vadd.f32 0.0, %v343
      %345 = vmatmul.f32.gmra.mxu0 %v278
      %v346 = vpop.f32.mrf.mxu0
      %v347 = vadd.f32 0.0, %v346
      %348 = vmatmul.f32.gmra.mxu0 %v281
      %v349 = vpop.f32.mrf.mxu0
      %v350 = vadd.f32 0.0, %v349
      %351 = vmatmul.f32.gmra.mxu0 %v284
      %v352 = vpop.f32.mrf.mxu0
      %v353 = vadd.f32 0.0, %v352
      %354 = vmatmul.f32.gmra.mxu0 %v287
      %v355 = vpop.f32.mrf.mxu0
      %v356 = vadd.f32 0.0, %v355
      %357 = vmatmul.f32.gmra.mxu0 %v290
      %v358 = vpop.f32.mrf.mxu0
      %v359 = vadd.f32 0.0, %v358
      %360 = vmatmul.f32.gmra.mxu0 %v293
      %v361 = vpop.f32.mrf.mxu0
      %v362 = vadd.f32 0.0, %v361
      %363 = vmatmul.f32.gmra.mxu0 %v296
      %v364 = vpop.f32.mrf.mxu0
      %v365 = vadd.f32 0.0, %v364
      %366 = vmatmul.f32.gmra.mxu0 %v299
      %v367 = vpop.f32.mrf.mxu0
      %v368 = vadd.f32 0.0, %v367
      %369 = vmatmul.f32.gmra.mxu0 %v302
      %v370 = vpop.f32.mrf.mxu0
      %v371 = vadd.f32 0.0, %v370
      %372 = vmatmul.f32.gmra.mxu0 %v305
      %v373 = vpop.f32.mrf.mxu0
      %v374 = vadd.f32 0.0, %v373
      %375 = vmatmul.f32.gmra.mxu0 %v308
      %v376 = vpop.f32.mrf.mxu0
      %v377 = vadd.f32 0.0, %v376
      %378 = vdwg.mxu0
      %vm379 = vcmask 15360
      %380 = vst.msk [vmem:[%s232] sm:$0xff] %vm379, %v332
      %381 = vst.msk [vmem:[%s232 + $0x8] sm:$0xff] %vm379, %v335
      %382 = vst.msk [vmem:[%s232 + $0x10] sm:$0xff] %vm379, %v338
      %383 = vst.msk [vmem:[%s232 + $0x18] sm:$0xff] %vm379, %v341
      %384 = vst.msk [vmem:[%s232 + $0x20] sm:$0xff] %vm379, %v344
      %385 = vst.msk [vmem:[%s232 + $0x28] sm:$0xff] %vm379, %v347
      %386 = vst.msk [vmem:[%s232 + $0x30] sm:$0xff] %vm379, %v350
      %387 = vst.msk [vmem:[%s232 + $0x38] sm:$0xff] %vm379, %v353
      %388 = vst.msk [vmem:[%s232 + $0x40] sm:$0xff] %vm379, %v356
      %389 = vst.msk [vmem:[%s232 + $0x48] sm:$0xff] %vm379, %v359
      %390 = vst.msk [vmem:[%s232 + $0x50] sm:$0xff] %vm379, %v362
      %391 = vst.msk [vmem:[%s232 + $0x58] sm:$0xff] %vm379, %v365
      %392 = vst.msk [vmem:[%s232 + $0x60] sm:$0xff] %vm379, %v368
      %393 = vst.msk [vmem:[%s232 + $0x68] sm:$0xff] %vm379, %v371
      %394 = vst.msk [vmem:[%s232 + $0x70] sm:$0xff] %vm379, %v374
      %395 = vst.msk [vmem:[%s232 + $0x78] sm:$0xff] %vm379, %v377
      %v396 = vld [vmem:[%s237] sm:$0x1]
      %v397 = vsel %vm379, %v332, 0.0
      %v398 = vsel %vm379, %v335, 0.0
      %v399 = vadd.f32 %v397, %v398
      %v400 = vsel %vm379, %v338, 0.0
      %v401 = vadd.f32 %v399, %v400
      %v402 = vsel %vm379, %v341, 0.0
      %v403 = vadd.f32 %v401, %v402
      %v404 = vsel %vm379, %v344, 0.0
      %v405 = vadd.f32 %v403, %v404
      %v406 = vsel %vm379, %v347, 0.0
      %v407 = vadd.f32 %v405, %v406
      %v408 = vsel %vm379, %v350, 0.0
      %v409 = vadd.f32 %v407, %v408
      %v410 = vsel %vm379, %v353, 0.0
      %v411 = vadd.f32 %v409, %v410
      %v412 = vsel %vm379, %v356, 0.0
      %v413 = vadd.f32 %v411, %v412
      %v414 = vsel %vm379, %v359, 0.0
      %v415 = vadd.f32 %v413, %v414
      %v416 = vsel %vm379, %v362, 0.0
      %v417 = vadd.f32 %v415, %v416
      %v418 = vsel %vm379, %v365, 0.0
      %v419 = vadd.f32 %v417, %v418
      %v420 = vsel %vm379, %v368, 0.0
      %v421 = vadd.f32 %v419, %v420
      %v422 = vsel %vm379, %v371, 0.0
      %v423 = vadd.f32 %v421, %v422
      %v424 = vsel %vm379, %v374, 0.0
      %v425 = vadd.f32 %v423, %v424
      %v426 = vsel %vm379, %v377, 0.0
      %v427 = vadd.f32 %v425, %v426
      %v428 = vrot.slane %v427, 4
      %v429 = vadd.f32 %v427, %v428
      %v430 = vrot.slane %v429, 2
      %v431 = vadd.f32 %v429, %v430
      %v432 = vrot.slane %v431, 1
      %v433 = vadd.f32 %v431, %v432
      %v434 = vadd.f32 %v396, %v433
      %vm435 = vcmask 8192
      %436 = vst.msk [vmem:[%s237] sm:$0x1] %vm435, %v434
      %v437 = vld [vmem:[%s237 + $0x1] sm:$0x1]
      %v438 = vmul.f32 %v332, %v332
      %v439 = vmul.f32 %v335, %v335
      %v440 = vmul.f32 %v338, %v338
      %v441 = vmul.f32 %v341, %v341
      %v442 = vmul.f32 %v344, %v344
      %v443 = vmul.f32 %v347, %v347
      %v444 = vmul.f32 %v350, %v350
      %v445 = vmul.f32 %v353, %v353
      %v446 = vmul.f32 %v356, %v356
      %v447 = vmul.f32 %v359, %v359
      %v448 = vmul.f32 %v362, %v362
      %v449 = vmul.f32 %v365, %v365
      %v450 = vmul.f32 %v368, %v368
      %v451 = vmul.f32 %v371, %v371
      %v452 = vmul.f32 %v374, %v374
      %v453 = vmul.f32 %v377, %v377
      %v454 = vsel %vm379, %v438, 0.0
      %v455 = vsel %vm379, %v439, 0.0
      %v456 = vadd.f32 %v454, %v455
      %v457 = vsel %vm379, %v440, 0.0
      %v458 = vadd.f32 %v456, %v457
      %v459 = vsel %vm379, %v441, 0.0
      %v460 = vadd.f32 %v458, %v459
      %v461 = vsel %vm379, %v442, 0.0
      %v462 = vadd.f32 %v460, %v461
      %v463 = vsel %vm379, %v443, 0.0
      %v464 = vadd.f32 %v462, %v463
      %v465 = vsel %vm379, %v444, 0.0
      %v466 = vadd.f32 %v464, %v465
      %v467 = vsel %vm379, %v445, 0.0
      %v468 = vadd.f32 %v466, %v467
      %v469 = vsel %vm379, %v446, 0.0
      %v470 = vadd.f32 %v468, %v469
      %v471 = vsel %vm379, %v447, 0.0
      %v472 = vadd.f32 %v470, %v471
      %v473 = vsel %vm379, %v448, 0.0
      %v474 = vadd.f32 %v472, %v473
      %v475 = vsel %vm379, %v449, 0.0
      %v476 = vadd.f32 %v474, %v475
      %v477 = vsel %vm379, %v450, 0.0
      %v478 = vadd.f32 %v476, %v477
      %v479 = vsel %vm379, %v451, 0.0
      %v480 = vadd.f32 %v478, %v479
      %v481 = vsel %vm379, %v452, 0.0
      %v482 = vadd.f32 %v480, %v481
      %v483 = vsel %vm379, %v453, 0.0
      %v484 = vadd.f32 %v482, %v483
      %v485 = vrot.slane %v484, 4
      %v486 = vadd.f32 %v484, %v485
      %v487 = vrot.slane %v486, 2
      %v488 = vadd.f32 %v486, %v487
      %v489 = vrot.slane %v488, 1
      %v490 = vadd.f32 %v488, %v489
      %v491 = vadd.f32 %v437, %v490
      %492 = vst.msk [vmem:[%s237 + $0x1] sm:$0x1] %vm435, %v491
      %s493 = smul.u32 16, %s20
      %p494 = scmp.lt.s32.totalorder %s19, 1
      %s495 = scalar_select %p494, %s19, 1
      %p496 = scmp.lt.s32.totalorder %s493, 15
      %s497 = scalar_select %p496, %s493, 15
      %s498 = smul.addr %s495, 16
      %s499 = sadd.s32 %s497, %s498
      %s500 = smul.addr %s499, 8
      %s501 = scalar_lea.vmem %s2, %s500
      %p502 = scmp.lt.s32.totalorder %s19, 1
      %s503 = scalar_select %p502, %s19, 1
      %s504 = smul.addr %s503, 2
      %s505 = scalar_lea.vmem %s3, %s504
      // Predicated region
      $region33: #{factorized_reduce.2} parent=27 // pred_check
        %p506 = pneg %p101
      $region34: #{factorized_reduce.2} parent=27 // pred_check_branch
        %508 = sbr.rel (%p506) target = $region36
      $region35: #{factorized_reduce.2} parent=27 // pred_region
        %s509 = smul.u32 16, %s20
      $region36: #{factorized_reduce.2} parent=27 // pred_fallthru
        _
      // Predicated region
      $region37: #{factorized_reduce.2} parent=27 // pred_check
        %p510 = pneg %p127
      $region38: #{factorized_reduce.2} parent=27 // pred_check_branch
        %512 = sbr.rel (%p510) target = $region40
      $region39: #{factorized_reduce.2} parent=27 // pred_region
        _
      $region40: #{factorized_reduce.2} parent=27 // pred_fallthru
        _
    $region28: #{factorized_reduce.2} parent=5 // pred_fallthru
      _
    %p513 = scmp.le.s32.totalorder 2, %s10
    // Predicated region
    $region41: #{factorized_reduce.2} parent=5 // pred_check
      %p514 = pneg %p513
    $region42: #{factorized_reduce.2} parent=5 // pred_check_branch
      %516 = sbr.rel (%p514) target = $region44
    $region43: #{factorized_reduce.2} parent=5 // pred_region
      %s517 = ssub.s32 %s10, 2
      // Predicated region
      $region45: #{factorized_reduce.2} parent=43 // pred_check
        %p518 = pneg %p107
      $region46: #{factorized_reduce.2} parent=43 // pred_check_branch
        %520 = sbr.rel (%p518) target = $region48
      $region47: #{factorized_reduce.2} parent=43 // pred_region
        %s521 = smul.u32 16, %s22
        %p522 = scmp.lt.s32.totalorder %s21, 1
        %s523 = scalar_select %p522, %s21, 1
        %p524 = scmp.lt.s32.totalorder %s521, 15
        %s525 = scalar_select %p524, %s521, 15
        %s526 = smul.addr %s523, 16
        %s527 = sadd.s32 %s525, %s526
        %s528 = smul.addr %s527, 8
        %s529 = scalar_lea.vmem %s2, %s528
      $region48: #{factorized_reduce.2} parent=43 // pred_fallthru
        _
      // Predicated region
      $region49: #{factorized_reduce.2} parent=43 // pred_check
        %p530 = pneg %p133
      $region50: #{factorized_reduce.2} parent=43 // pred_check_branch
        %532 = sbr.rel (%p530) target = $region52
      $region51: #{factorized_reduce.2} parent=43 // pred_region
        %p533 = scmp.lt.s32.totalorder %s21, 1
        %s534 = scalar_select %p533, %s21, 1
        %s535 = smul.addr %s534, 2
        %s536 = scalar_lea.vmem %s3, %s535
      $region52: #{factorized_reduce.2} parent=43 // pred_fallthru
        _
    $region44: #{factorized_reduce.2} parent=5 // pred_fallthru
      _
  $region6: #{factorized_reduce.2} parent=0 // loop_footer
    %s14 = sadd.s32 1, %s10
  $region7: #{factorized_reduce.2} parent=0 // loop_footer_branch
    %9 = sbr.rel target = $region3
  $region8: #{factorized_reduce.2} parent=0 // loop_exit
    _

</llo_original>
